<compile_context>
chip_gen: v7x
topology: tpu7x:2x2x1
jax: 0.10.0
libtpu: 0.0.40
codegen_flags: <defaults>
</compile_context>

<pallas_src>
import functools

import jax
import jax.numpy as jnp
from jax.experimental import pallas as pl
from jax.experimental.pallas import tpu as pltpu


_BN_EPS = 1e-5
_NEG_SLOPE = 0.1
_LANE = 128
_NEG_BIG = -1e30


def _round_up(x, m):
    return (x + m - 1) // m * m


def _cdiv(a, b):
    return (a + b - 1) // b


# --------------------------------------------------------------------------- #
# Kernel
# --------------------------------------------------------------------------- #
def encoder_kernel(x_ref, w1_ref, gamma_ref, beta_ref, w2_ref, b2_ref,
                   out_ref, acc_ref):
    k = pl.program_id(0)

    @pl.when(k == 0)
    def _init():
        acc_ref[...] = jnp.zeros_like(acc_ref)

    # ---- Linear 1 (no bias), K-tiled: accumulate (B, TK) @ (TK, E) in f32 ----
    acc_ref[...] += jnp.dot(x_ref[...], w1_ref[...],
                            preferred_element_type=jnp.float32)

    @pl.when(k == pl.num_programs(0) - 1)
    def _epilogue():
        h = acc_ref[...]                                            # (B, E) f32

        # ---- BatchNorm1d, training-mode batch stats (biased variance) ----
        # Fused affine: one multiply-add per element.
        mean = jnp.mean(h, axis=0, keepdims=True)                   # (1, E)
        var = jnp.mean((h - mean) * (h - mean), axis=0, keepdims=True)
        scale = gamma_ref[...] * jax.lax.rsqrt(var + _BN_EPS)       # (1, E)
        shift = beta_ref[...] - mean * scale                        # (1, E)
        h_bn = h * scale + shift

        # ---- LeakyReLU(negative_slope=0.1) ----
        h_act = jnp.where(h_bn >= 0, h_bn, _NEG_SLOPE * h_bn)

        # ---- Linear 2 (with bias): (B, E) @ (E, Tp) + b  (Tp lane-padded) ----
        # Padded topic lanes: W2 cols are 0, b2 lanes are -1e30 -> exp underflows
        # to 0, so no softmax mass leaks into padded topics.
        logits = jnp.dot(h_act, w2_ref[...],
                         preferred_element_type=jnp.float32) + b2_ref[...]

        # ---- Softmax over (padded) topic lanes ----
        m = jnp.max(logits, axis=1, keepdims=True)
        e = jnp.exp(logits - m)
        s = jnp.sum(e, axis=1, keepdims=True)
        out_ref[...] = e * pl.reciprocal(s, approx=False)


# --------------------------------------------------------------------------- #
# Tiling / VMEM planning
# --------------------------------------------------------------------------- #
def _vmem_capacity_bytes():
    """Per-TensorCore VMEM capacity; conservative 64 MiB (v7x) fallback."""
    try:
        info = pltpu.get_tpu_info()
        cap = getattr(info, "vmem_capacity_bytes", None)
        if cap:
            return int(cap)
    except Exception:
        pass
    return 64 << 20


def _plan(B, V, E, Tp, tk_override=None):
    """Pick the vocab tile (tk), grid length (kt), padded vocab, and vmem limit."""
    cap = _vmem_capacity_bytes()
    budget = int(cap * 0.62)                       # headroom for compiler scratch

    # Resident f32 state (accumulator is the only term scaling with B; constants
    # and the output block are counted double-buffered to stay conservative).
    resident = 4 * (B * E + 2 * (B * Tp + E * Tp + 2 * E + Tp))
    avail = budget - resident
    if avail < (1 << 20):
        raise ValueError(
            f"Batch*embedding too large for VMEM: resident f32 state is "
            f"{resident} bytes vs budget {budget} bytes (B={B}, E={E}).")

    per_tk = 2 * 2 * (B + E)                       # double-buffered bf16 tile bytes / vocab row
    tk_cap = 16384 if cap >= (100 << 20) else 8192  # v5e/v6e vs v7x
    tk_max = max(256, min((avail // per_tk) // _LANE * _LANE, tk_cap))
    if tk_override is not None:
        tk_max = max(_LANE, (int(tk_override) // _LANE) * _LANE)

    # Even split of the 128-aligned vocab: bounds the zero-padded rows that get
    # streamed from HBM (instead of padding V all the way up to a multiple of tk).
    Vp128 = _round_up(V, _LANE)
    kt = _cdiv(Vp128, tk_max)
    tk = _round_up(_cdiv(Vp128, kt), _LANE)
    Vp = tk * kt

    tile_bytes = per_tk * tk
    vmem_limit = min(int(cap * 0.75),
                     max(32 << 20, int(1.4 * (tile_bytes + resident))))
    return tk, kt, Vp, vmem_limit


# --------------------------------------------------------------------------- #
# Encoder wrapper (parameters prepared once, outside the per-call path)
# --------------------------------------------------------------------------- #
class PallasEncoder:
    """Pallas TPU forward of the GAN Encoder (training-mode BatchNorm semantics).

    The whole batch is processed in a single kernel invocation so BatchNorm batch
    statistics exactly match PyTorch; the (B, E) f32 accumulator must fit VMEM.
    """

    def __init__(self, w1, gamma, beta, w2, b2, *, batch_size, tk=None):
        V, E = w1.shape
        T = w2.shape[1]
        Tp = _round_up(T, _LANE)
        B = int(batch_size)
        self.B, self.V, self.E, self.T, self.Tp = B, V, E, T, Tp
        self.tk, self.kt, self.Vp, vmem_limit = _plan(B, V, E, Tp, tk)

        # ---- one-time parameter prep (hoisted out of the per-call path) ----
        self.w1 = jnp.pad(w1.astype(jnp.float32),
                          ((0, self.Vp - V), (0, 0))).astype(jnp.bfloat16)
        self.gamma = gamma.reshape(1, E).astype(jnp.float32)
        self.beta = beta.reshape(1, E).astype(jnp.float32)
        # Lane-dense topic axis: zero W2 columns, -1e30 bias lanes.
        self.w2 = jnp.pad(w2.astype(jnp.float32), ((0, 0), (0, Tp - T)))
        self.b2 = jnp.pad(b2.reshape(1, T).astype(jnp.float32),
                          ((0, 0), (0, Tp - T)), constant_values=_NEG_BIG)

        tk_, E_, Tp_ = self.tk, E, Tp
        grid_spec = pltpu.PrefetchScalarGridSpec(
            num_scalar_prefetch=0,
            grid=(self.kt,),
            in_specs=[
                pl.BlockSpec((B, tk_), lambda k: (0, k)),    # doc_x tile (bf16)
                pl.BlockSpec((tk_, E_), lambda k: (k, 0)),   # W1 tile   (bf16)
                pl.BlockSpec((1, E_), lambda k: (0, 0)),     # gamma
                pl.BlockSpec((1, E_), lambda k: (0, 0)),     # beta
                pl.BlockSpec((E_, Tp_), lambda k: (0, 0)),   # W2 (lane-padded)
                pl.BlockSpec((1, Tp_), lambda k: (0, 0)),    # b2 (lane-padded)
            ],
            out_specs=pl.BlockSpec((B, Tp_), lambda k: (0, 0)),
            scratch_shapes=[pltpu.VMEM((B, E_), jnp.float32)],
        )

        cost = pl.CostEstimate(
            flops=2 * B * self.Vp * E + 2 * B * E * Tp,
            transcendentals=B * Tp,
            bytes_accessed=(2 * (B * self.Vp + self.Vp * E)
                            + 4 * (E * Tp + 2 * E + Tp + B * Tp)),
        )

        self._call = pl.pallas_call(
            encoder_kernel,
            out_shape=jax.ShapeDtypeStruct((B, Tp), jnp.float32),
            grid_spec=grid_spec,
            compiler_params=pltpu.CompilerParams(
                dimension_semantics=("arbitrary",),          # K is a reduction axis
                vmem_limit_bytes=vmem_limit,
            ),
            cost_estimate=cost,
        )

    def __call__(self, doc_x):
        """doc_x: (B, V) float32 bag-of-words -> (B, T) float32 topic proportions."""
        assert doc_x.shape == (self.B, self.V), doc_x.shape
        x = doc_x.astype(jnp.bfloat16)               # bf16 stream (half HBM bytes)
        pad = self.Vp - self.V
        if pad:
            x = jnp.pad(x, ((0, 0), (0, pad)))       # <= O(128)-row zero pad
        out = self._call(x, self.w1, self.gamma, self.beta, self.w2, self.b2)
        return out[:, :self.T]                       # drop lane padding


# --------------------------------------------------------------------------- #
# Parameters / pure-JAX reference
# --------------------------------------------------------------------------- #
def init_params(key, vocab_size, embedding_dim, topic_num):
    """Deterministic synthetic parameters matching the PyTorch module's shapes."""
    k1, k2, k3 = jax.random.split(key, 3)
    bound1 = 1.0 / jnp.sqrt(vocab_size)
    w1 = jax.random.uniform(k1, (vocab_size, embedding_dim),
                            minval=-bound1, maxval=bound1, dtype=jnp.float32)
    gamma = jnp.ones((1, embedding_dim), jnp.float32)
    beta = jnp.zeros((1, embedding_dim), jnp.float32)
    bound2 = 1.0 / jnp.sqrt(embedding_dim)
    w2 = jax.random.uniform(k2, (embedding_dim, topic_num),
                            minval=-bound2, maxval=bound2, dtype=jnp.float32)
    b2 = jax.random.uniform(k3, (1, topic_num),
                            minval=-bound2, maxval=bound2, dtype=jnp.float32)
    return w1, gamma, beta, w2, b2


def reference_forward(doc_x, w1, gamma, beta, w2, b2):
    """Pure-JAX f32 reference of the PyTorch training-mode forward."""
    h = doc_x @ w1
    mean = jnp.mean(h, axis=0, keepdims=True)
    var = jnp.mean((h - mean) ** 2, axis=0, keepdims=True)
    h_bn = (h - mean) * jax.lax.rsqrt(var + _BN_EPS) * gamma + beta
    h_act = jnp.where(h_bn >= 0, h_bn, _NEG_SLOPE * h_bn)
    logits = h_act @ w2 + b2
    return jax.nn.softmax(logits, axis=1)


# --------------------------------------------------------------------------- #
# Demo / self-check
# --------------------------------------------------------------------------- #
if __name__ == "__main__":
    # Small demo shapes consistent with the module (vocab deliberately not a
    # multiple of the tile so padding / multi-step K accumulation is exercised).
    B = 64           # batch of bag-of-words docs
    V = 1000         # vocab_size
    E = 128          # embedding_dim
    T = 16           # topic_num

    key = jax.random.PRNGKey(0)
    kx, kp = jax.random.split(key)

    doc_x = jax.random.uniform(kx, (B, V), minval=0.0, maxval=3.0,
                               dtype=jnp.float32)
    w1, gamma, beta, w2, b2 = init_params(kp, V, E, T)

    # Parameters are padded / converted ONCE here; force tk=256 -> 4 grid steps
    # to exercise the K-tiled accumulation pipeline.
    enc = PallasEncoder(w1, gamma, beta, w2, b2, batch_size=B, tk=256)
    forward = jax.jit(enc.__call__)   # fuses the per-call doc_x pad/cast + output slice

    out = jax.block_until_ready(forward(doc_x))
    ref = reference_forward(doc_x, w1, gamma, beta, w2, b2)

    assert out.shape == (B, T)
    row_sums = jnp.sum(out, axis=1)
    assert bool(jnp.all(jnp.abs(row_sums - 1.0) < 1e-4))
    # bf16-streamed first matmul: allow a small tolerance vs the f32 reference.
    assert bool(jnp.max(jnp.abs(out - ref)) < 5e-2)

    print("KERNEL_OK")
</pallas_src>

<mosaic_0001>
module attributes {stable_mosaic.version = 11 : i64} {
  func.func @encoder_kernel(%arg0: i32, %arg1: memref<64x256xbf16, #tpu.memory_space<vmem>>, %arg2: memref<256x128xbf16, #tpu.memory_space<vmem>>, %arg3: memref<1x128xf32, #tpu.memory_space<vmem>>, %arg4: memref<1x128xf32, #tpu.memory_space<vmem>>, %arg5: memref<128x128xf32, #tpu.memory_space<vmem>>, %arg6: memref<1x128xf32, #tpu.memory_space<vmem>>, %arg7: memref<64x128xf32, #tpu.memory_space<vmem>>, %arg8: memref<64x128xf32, #tpu.memory_space<vmem>>) attributes {dimension_semantics = [#tpu.dimension_semantics<arbitrary>], iteration_bounds = array<i64: 4>, scalar_prefetch = 0 : i64, scratch_operands = 1 : i64, tpu.core_type = #tpu.core_type<tc>, window_params = [{transform_indices = @transform_0, window_bounds = array<i64: 64, 256>}, {transform_indices = @transform_1, window_bounds = array<i64: 256, 128>}, {pipeline_mode = #tpu.pipeline_mode<synchronous>, transform_indices = @transform_2, window_bounds = array<i64: 1, 128>}, {pipeline_mode = #tpu.pipeline_mode<synchronous>, transform_indices = @transform_3, window_bounds = array<i64: 1, 128>}, {pipeline_mode = #tpu.pipeline_mode<synchronous>, transform_indices = @transform_4, window_bounds = array<i64: 128, 128>}, {pipeline_mode = #tpu.pipeline_mode<synchronous>, transform_indices = @transform_5, window_bounds = array<i64: 1, 128>}, {pipeline_mode = #tpu.pipeline_mode<synchronous>, transform_indices = @transform_6, window_bounds = array<i64: 64, 128>}]} {
    %c0_i32 = arith.constant 0 : i32
    %0 = arith.cmpi eq, %arg0, %c0_i32 : i32
    %1 = arith.extui %0 : i1 to i32
    %c0_i32_0 = arith.constant 0 : i32
    %2 = arith.cmpi ne, %1, %c0_i32_0 : i32
    scf.if %2 {
      %cst_9 = arith.constant 0.000000e+00 : f32
      %12 = vector.broadcast %cst_9 : f32 to vector<64x128xf32>
      %c0_10 = arith.constant 0 : index
      %c0_11 = arith.constant 0 : index
      %13 = vector.load %arg8[%c0_10, %c0_11] : memref<64x128xf32, #tpu.memory_space<vmem>>, vector<64x128xf32>
      tpu.vector_store %arg8[%c0_10, %c0_11], %12 {strides = array<i32>} : memref<64x128xf32, #tpu.memory_space<vmem>>, vector<64x128xf32>,
    } else {
    }
    %c0 = arith.constant 0 : index
    %c0_1 = arith.constant 0 : index
    %3 = vector.load %arg8[%c0, %c0_1] : memref<64x128xf32, #tpu.memory_space<vmem>>, vector<64x128xf32>
    %c0_2 = arith.constant 0 : index
    %c0_3 = arith.constant 0 : index
    %4 = vector.load %arg1[%c0_2, %c0_3] : memref<64x256xbf16, #tpu.memory_space<vmem>>, vector<64x256xbf16>
    %c0_4 = arith.constant 0 : index
    %c0_5 = arith.constant 0 : index
    %5 = vector.load %arg2[%c0_4, %c0_5] : memref<256x128xbf16, #tpu.memory_space<vmem>>, vector<256x128xbf16>
    %cst = arith.constant dense<0.000000e+00> : vector<64x128xf32>
    %6 = tpu.matmul %4, %5, %cst {dimension_numbers = #tpu.dot_dimension_numbers<[1], [0], [0], [1], [0, 0, 1, 1], [], []>} : vector<64x256xbf16>, vector<256x128xbf16>, vector<64x128xf32> -> vector<64x128xf32>
    %7 = arith.addf %3, %6 : vector<64x128xf32>
    %c0_6 = arith.constant 0 : index
    %c0_7 = arith.constant 0 : index
    %8 = vector.load %arg8[%c0_6, %c0_7] : memref<64x128xf32, #tpu.memory_space<vmem>>, vector<64x128xf32>
    tpu.vector_store %arg8[%c0_6, %c0_7], %7 {strides = array<i32>} : memref<64x128xf32, #tpu.memory_space<vmem>>, vector<64x128xf32>,
    %c3_i32 = arith.constant 3 : i32
    %9 = arith.cmpi eq, %arg0, %c3_i32 : i32
    %10 = arith.extui %9 : i1 to i32
    %c0_i32_8 = arith.constant 0 : i32
    %11 = arith.cmpi ne, %10, %c0_i32_8 : i32
    scf.if %11 {
      %c0_9 = arith.constant 0 : index
      %c0_10 = arith.constant 0 : index
      %12 = vector.load %arg8[%c0_9, %c0_10] : memref<64x128xf32, #tpu.memory_space<vmem>>, vector<64x128xf32>
      %cst_11 = arith.constant dense<0.000000e+00> : vector<128xf32>
      %13 = vector.multi_reduction <add>, %12, %cst_11 [0] : vector<64x128xf32> to vector<128xf32>
      %14 = vector.shape_cast %13 : vector<128xf32> to vector<1x128xf32>
      %cst_12 = arith.constant 6.400000e+01 : f32
      %15 = vector.broadcast %cst_12 : f32 to vector<1x128xf32>
      %16 = arith.divf %14, %15 : vector<1x128xf32>
      %17 = vector.broadcast %16 : vector<1x128xf32> to vector<64x128xf32>
      %18 = arith.subf %12, %17 : vector<64x128xf32>
      %19 = vector.broadcast %16 : vector<1x128xf32> to vector<64x128xf32>
      %20 = arith.subf %12, %19 : vector<64x128xf32>
      %21 = arith.mulf %18, %20 : vector<64x128xf32>
      %cst_13 = arith.constant dense<0.000000e+00> : vector<128xf32>
      %22 = vector.multi_reduction <add>, %21, %cst_13 [0] : vector<64x128xf32> to vector<128xf32>
      %23 = vector.shape_cast %22 : vector<128xf32> to vector<1x128xf32>
      %cst_14 = arith.constant 6.400000e+01 : f32
      %24 = vector.broadcast %cst_14 : f32 to vector<1x128xf32>
      %25 = arith.divf %23, %24 : vector<1x128xf32>
      %c0_15 = arith.constant 0 : index
      %c0_16 = arith.constant 0 : index
      %26 = vector.load %arg3[%c0_15, %c0_16] : memref<1x128xf32, #tpu.memory_space<vmem>>, vector<1x128xf32>
      %cst_17 = arith.constant 9.99999974E-6 : f32
      %27 = vector.broadcast %cst_17 : f32 to vector<1x128xf32>
      %28 = arith.addf %25, %27 : vector<1x128xf32>
      %29 = math.rsqrt %28 : vector<1x128xf32>
      %30 = arith.mulf %26, %29 : vector<1x128xf32>
      %c0_18 = arith.constant 0 : index
      %c0_19 = arith.constant 0 : index
      %31 = vector.load %arg4[%c0_18, %c0_19] : memref<1x128xf32, #tpu.memory_space<vmem>>, vector<1x128xf32>
      %32 = arith.mulf %16, %30 : vector<1x128xf32>
      %33 = arith.subf %31, %32 : vector<1x128xf32>
      %34 = vector.broadcast %30 : vector<1x128xf32> to vector<64x128xf32>
      %35 = arith.mulf %12, %34 : vector<64x128xf32>
      %36 = vector.broadcast %33 : vector<1x128xf32> to vector<64x128xf32>
      %37 = arith.addf %35, %36 : vector<64x128xf32>
      %cst_20 = arith.constant 0.000000e+00 : f32
      %38 = vector.broadcast %cst_20 : f32 to vector<64x128xf32>
      %39 = arith.cmpf oge, %37, %38 : vector<64x128xf32>
      %cst_21 = arith.constant 1.000000e-01 : f32
      %40 = vector.broadcast %cst_21 : f32 to vector<64x128xf32>
      %41 = arith.mulf %40, %37 : vector<64x128xf32>
      %42 = arith.select %39, %37, %41 : vector<64x128xi1>, vector<64x128xf32>
      %c0_22 = arith.constant 0 : index
      %c0_23 = arith.constant 0 : index
      %43 = vector.load %arg5[%c0_22, %c0_23] : memref<128x128xf32, #tpu.memory_space<vmem>>, vector<128x128xf32>
      %cst_24 = arith.constant dense<0.000000e+00> : vector<64x128xf32>
      %44 = tpu.matmul %42, %43, %cst_24 {dimension_numbers = #tpu.dot_dimension_numbers<[1], [0], [0], [1], [0, 0, 1, 1], [], []>} : vector<64x128xf32>, vector<128x128xf32>, vector<64x128xf32> -> vector<64x128xf32>
      %c0_25 = arith.constant 0 : index
      %c0_26 = arith.constant 0 : index
      %45 = vector.load %arg6[%c0_25, %c0_26] : memref<1x128xf32, #tpu.memory_space<vmem>>, vector<1x128xf32>
      %46 = vector.broadcast %45 : vector<1x128xf32> to vector<64x128xf32>
      %47 = arith.addf %44, %46 : vector<64x128xf32>
      %cst_27 = arith.constant dense<0xFF800000> : vector<64xf32>
      %48 = vector.multi_reduction <maximumf>, %47, %cst_27 [1] : vector<64x128xf32> to vector<64xf32>
      %49 = vector.shape_cast %48 : vector<64xf32> to vector<64x1xf32>
      %50 = vector.broadcast %49 : vector<64x1xf32> to vector<64x128xf32>
      %51 = arith.subf %47, %50 : vector<64x128xf32>
      %52 = math.exp %51 : vector<64x128xf32>
      %cst_28 = arith.constant dense<0.000000e+00> : vector<64xf32>
      %53 = vector.multi_reduction <add>, %52, %cst_28 [1] : vector<64x128xf32> to vector<64xf32>
      %54 = vector.shape_cast %53 : vector<64xf32> to vector<64x1xf32>
      %55 = tpu.reciprocal %54 : vector<64x1xf32> -> vector<64x1xf32>
      %56 = vector.broadcast %55 : vector<64x1xf32> to vector<64x128xf32>
      %57 = arith.mulf %52, %56 : vector<64x128xf32>
      %c0_29 = arith.constant 0 : index
      %c0_30 = arith.constant 0 : index
      %58 = vector.load %arg7[%c0_29, %c0_30] : memref<64x128xf32, #tpu.memory_space<vmem>>, vector<64x128xf32>
      tpu.vector_store %arg7[%c0_29, %c0_30], %57 {strides = array<i32>} : memref<64x128xf32, #tpu.memory_space<vmem>>, vector<64x128xf32>,
    } else {
    }
    return
  }
  func.func @transform_0(%arg0: i32) -> (i32, i32) {
    %c0_i32 = arith.constant 0 : i32
    %c0_i32_0 = arith.constant 0 : i32
    return %c0_i32, %arg0 : i32, i32
  }
  func.func @transform_1(%arg0: i32) -> (i32, i32) {
    %c0_i32 = arith.constant 0 : i32
    %c0_i32_0 = arith.constant 0 : i32
    return %arg0, %c0_i32 : i32, i32
  }
  func.func @transform_2(%arg0: i32) -> (i32, i32) {
    %c0_i32 = arith.constant 0 : i32
    %c0_i32_0 = arith.constant 0 : i32
    %c0_i32_1 = arith.constant 0 : i32
    return %c0_i32, %c0_i32_0 : i32, i32
  }
  func.func @transform_3(%arg0: i32) -> (i32, i32) {
    %c0_i32 = arith.constant 0 : i32
    %c0_i32_0 = arith.constant 0 : i32
    %c0_i32_1 = arith.constant 0 : i32
    return %c0_i32, %c0_i32_0 : i32, i32
  }
  func.func @transform_4(%arg0: i32) -> (i32, i32) {
    %c0_i32 = arith.constant 0 : i32
    %c0_i32_0 = arith.constant 0 : i32
    %c0_i32_1 = arith.constant 0 : i32
    return %c0_i32, %c0_i32_0 : i32, i32
  }
  func.func @transform_5(%arg0: i32) -> (i32, i32) {
    %c0_i32 = arith.constant 0 : i32
    %c0_i32_0 = arith.constant 0 : i32
    %c0_i32_1 = arith.constant 0 : i32
    return %c0_i32, %c0_i32_0 : i32, i32
  }
  func.func @transform_6(%arg0: i32) -> (i32, i32) {
    %c0_i32 = arith.constant 0 : i32
    %c0_i32_0 = arith.constant 0 : i32
    %c0_i32_1 = arith.constant 0 : i32
    return %c0_i32, %c0_i32_0 : i32, i32
  }
}

</mosaic_0001>

<llo_original>
// kernel: a_call__.1
$region0: #{a_call__.1}
  #allocation0 [shape = 'u32[]', space=smem, size = 0x4, offset = 0x4, fixed_abs, tag = 'smem constant byte address 0x4 - core index']
  #allocation1 [shape = 'u32[144,128]{1,0:T(1,128)}', space=vmem, size = 0x12000, scoped, tag = 'internal scratch']
  #allocation2 [shape = 'f32[64,128]{1,0:T(8,128)}', space=vmem, size = 0x8000, scoped, tag = 'scratch operand']
  %s0 = inlined_call_operand.vmem [shape: bf16[64,1024], index: 0, kind: input, shape index: {}]
  %s1 = inlined_call_operand.vmem [shape: bf16[1024,128], index: 1, kind: input, shape index: {}]
  %s2 = inlined_call_operand.vmem [shape: f32[1,128], index: 2, kind: input, shape index: {}]
  %s3 = inlined_call_operand.vmem [shape: f32[1,128], index: 3, kind: input, shape index: {}]
  %s4 = inlined_call_operand.vmem [shape: f32[128,128], index: 4, kind: input, shape index: {}]
  %s5 = inlined_call_operand.vmem [shape: f32[1,128], index: 5, kind: input, shape index: {}]
  %s6 = inlined_call_operand.vmem [shape: f32[64,128], index: 6, kind: output, shape index: {}]
  %s7 = sld [smem:[#allocation0]]
  $region103: #{a_call__.1} parent=0
    _
  %s9 = ssub.s32 1, %s7
  %s10 = scalar_select 0, %s9, %s7
  $region1: #{a_call__.1} parent=0
    #allocation3 [shape = 'u8[65536]{0}', space=vmem, size = 0x10000, scoped, tag = 'input window, operand 0']
    loop: start=0, step=1, limit=6
    $region2: #{a_call__.1} parent=1 // loop_pre_header
      _
    $region3: #{a_call__.1} parent=1 // loop_header
      %s12 = sphi 0, %s16
      %p13 = scmp.ge.s32.totalorder %s12, 6
      %s22 = sphi 0, %s24
      %s25 = sphi 0, %s22
      %s26 = sphi 0, %s25
      %s42 = sphi 0, %s26
      %s48 = sphi 0, %s50
      %s51 = sphi 0, %s48
      %s52 = sphi 0, %s51
      %s68 = sphi 0, %s52
      %s72 = sphi 0, %s72
      %s74 = sphi 0, %s72
      %s75 = sphi 0, %s74
      %s89 = sphi 0, %s75
      %s93 = sphi 0, %s93
      %s95 = sphi 0, %s93
      %s96 = sphi 0, %s95
      %s110 = sphi 0, %s96
      %s114 = sphi 0, %s114
      %s116 = sphi 0, %s114
      %s117 = sphi 0, %s116
      %s131 = sphi 0, %s117
      %s135 = sphi 0, %s135
      %s137 = sphi 0, %s135
      %s138 = sphi 0, %s137
      %s152 = sphi 0, %s138
      %s156 = sphi 0, %s156
      %s158 = sphi 0, %s156
      %s159 = sphi 0, %s158
      %s173 = sphi 0, %s159
    $region4: #{a_call__.1} parent=1 // loop_header_branch
      %15 = sbr.rel (%p13) target = $region8
    $region5: #{a_call__.1} parent=1 // loop_body
      %s17 = ssub.s32 %s12, 1
      %s18 = ssub.s32 %s12, 2
      %s19 = sadd.s32 %s12, 1
      %s20 = ssub.s32 %s12, %s19
      %p21 = scmp.eq.s32.totalorder %s20, 0
      %s23 = sadd.s32 %s22, 1
      %s24 = scalar_select %p21, %s22, %s23
      %p27 = pneg %p21
      %p28 = scmp.eq.s32.totalorder %s12, 3
      %p29 = por %p27, %p28
      %p30 = scmp.ne.s32.totalorder %s22, %s25
      %p31 = scmp.eq.s32.totalorder %s12, 0
      %p32 = por %p30, %p31
      %p33 = scmp.ne.s32.totalorder %s22, %s25
      %p34 = scmp.eq.s32.totalorder %s17, 3
      %p35 = por %p33, %p34
      %p36 = scmp.ne.s32.totalorder %s25, %s26
      %p37 = scmp.eq.s32.totalorder %s17, 0
      %p38 = por %p36, %p37
      %p39 = scmp.ne.s32.totalorder %s25, %s26
      %p40 = scmp.eq.s32.totalorder %s18, 3
      %p41 = por %p39, %p40
      %p43 = scmp.ne.s32.totalorder %s26, %s42
      %p44 = scmp.eq.s32.totalorder %s18, 0
      %p45 = por %p43, %p44
      %s46 = ssub.s32 %s12, %s19
      %p47 = scmp.eq.s32.totalorder %s46, 0
      %s49 = sadd.s32 %s48, 1
      %s50 = scalar_select %p47, %s48, %s49
      %p53 = pneg %p47
      %p54 = scmp.eq.s32.totalorder %s12, 3
      %p55 = por %p53, %p54
      %p56 = scmp.ne.s32.totalorder %s48, %s51
      %p57 = scmp.eq.s32.totalorder %s12, 0
      %p58 = por %p56, %p57
      %p59 = scmp.ne.s32.totalorder %s48, %s51
      %p60 = scmp.eq.s32.totalorder %s17, 3
      %p61 = por %p59, %p60
      %p62 = scmp.ne.s32.totalorder %s51, %s52
      %p63 = scmp.eq.s32.totalorder %s17, 0
      %p64 = por %p62, %p63
      %p65 = scmp.ne.s32.totalorder %s51, %s52
      %p66 = scmp.eq.s32.totalorder %s18, 3
      %p67 = por %p65, %p66
      %p69 = scmp.ne.s32.totalorder %s52, %s68
      %p70 = scmp.eq.s32.totalorder %s18, 0
      %p71 = por %p69, %p70
      %s73 = sadd.s32 %s72, 1
      %p76 = scmp.eq.s32.totalorder %s12, 3
      %p77 = scmp.ne.s32.totalorder %s72, %s74
      %p78 = scmp.eq.s32.totalorder %s12, 0
      %p79 = por %p77, %p78
      %p80 = scmp.ne.s32.totalorder %s72, %s74
      %p81 = scmp.eq.s32.totalorder %s17, 3
      %p82 = por %p80, %p81
      %p83 = scmp.ne.s32.totalorder %s74, %s75
      %p84 = scmp.eq.s32.totalorder %s17, 0
      %p85 = por %p83, %p84
      %p86 = scmp.ne.s32.totalorder %s74, %s75
      %p87 = scmp.eq.s32.totalorder %s18, 3
      %p88 = por %p86, %p87
      %p90 = scmp.ne.s32.totalorder %s75, %s89
      %p91 = scmp.eq.s32.totalorder %s18, 0
      %p92 = por %p90, %p91
      %s94 = sadd.s32 %s93, 1
      %p97 = scmp.eq.s32.totalorder %s12, 3
      %p98 = scmp.ne.s32.totalorder %s93, %s95
      %p99 = scmp.eq.s32.totalorder %s12, 0
      %p100 = por %p98, %p99
      %p101 = scmp.ne.s32.totalorder %s93, %s95
      %p102 = scmp.eq.s32.totalorder %s17, 3
      %p103 = por %p101, %p102
      %p104 = scmp.ne.s32.totalorder %s95, %s96
      %p105 = scmp.eq.s32.totalorder %s17, 0
      %p106 = por %p104, %p105
      %p107 = scmp.ne.s32.totalorder %s95, %s96
      %p108 = scmp.eq.s32.totalorder %s18, 3
      %p109 = por %p107, %p108
      %p111 = scmp.ne.s32.totalorder %s96, %s110
      %p112 = scmp.eq.s32.totalorder %s18, 0
      %p113 = por %p111, %p112
      %s115 = sadd.s32 %s114, 1
      %p118 = scmp.eq.s32.totalorder %s12, 3
      %p119 = scmp.ne.s32.totalorder %s114, %s116
      %p120 = scmp.eq.s32.totalorder %s12, 0
      %p121 = por %p119, %p120
      %p122 = scmp.ne.s32.totalorder %s114, %s116
      %p123 = scmp.eq.s32.totalorder %s17, 3
      %p124 = por %p122, %p123
      %p125 = scmp.ne.s32.totalorder %s116, %s117
      %p126 = scmp.eq.s32.totalorder %s17, 0
      %p127 = por %p125, %p126
      %p128 = scmp.ne.s32.totalorder %s116, %s117
      %p129 = scmp.eq.s32.totalorder %s18, 3
      %p130 = por %p128, %p129
      %p132 = scmp.ne.s32.totalorder %s117, %s131
      %p133 = scmp.eq.s32.totalorder %s18, 0
      %p134 = por %p132, %p133
      %s136 = sadd.s32 %s135, 1
      %p139 = scmp.eq.s32.totalorder %s12, 3
      %p140 = scmp.ne.s32.totalorder %s135, %s137
      %p141 = scmp.eq.s32.totalorder %s12, 0
      %p142 = por %p140, %p141
      %p143 = scmp.ne.s32.totalorder %s135, %s137
      %p144 = scmp.eq.s32.totalorder %s17, 3
      %p145 = por %p143, %p144
      %p146 = scmp.ne.s32.totalorder %s137, %s138
      %p147 = scmp.eq.s32.totalorder %s17, 0
      %p148 = por %p146, %p147
      %p149 = scmp.ne.s32.totalorder %s137, %s138
      %p150 = scmp.eq.s32.totalorder %s18, 3
      %p151 = por %p149, %p150
      %p153 = scmp.ne.s32.totalorder %s138, %s152
      %p154 = scmp.eq.s32.totalorder %s18, 0
      %p155 = por %p153, %p154
      %s157 = sadd.s32 %s156, 1
      %p160 = scmp.eq.s32.totalorder %s12, 3
      %p161 = scmp.ne.s32.totalorder %s156, %s158
      %p162 = scmp.eq.s32.totalorder %s12, 0
      %p163 = por %p161, %p162
      %p164 = scmp.ne.s32.totalorder %s156, %s158
      %p165 = scmp.eq.s32.totalorder %s17, 3
      %p166 = por %p164, %p165
      %p167 = scmp.ne.s32.totalorder %s158, %s159
      %p168 = scmp.eq.s32.totalorder %s17, 0
      %p169 = por %p167, %p168
      %p170 = scmp.ne.s32.totalorder %s158, %s159
      %p171 = scmp.eq.s32.totalorder %s18, 3
      %p172 = por %p170, %p171
      %p174 = scmp.ne.s32.totalorder %s159, %s173
      %p175 = scmp.eq.s32.totalorder %s18, 0
      %p176 = por %p174, %p175
      %p177 = scmp.le.s32.totalorder 1, %s12
      %p178 = scmp.lt.s32.totalorder %s12, 5
      %p179 = pnand %p177, %p178
      %p180 = pneg %p179
      // Predicated region
      $region9: #{a_call__.1} parent=5 // pred_check
        _
      $region10: #{a_call__.1} parent=5 // pred_check_branch
        %182 = sbr.rel (%p179) target = $region12
      $region11: #{a_call__.1} parent=5 // pred_region
        %s183 = ssub.s32 %s12, 1
        // Predicated region
        $region13: #{a_call__.1} parent=11 // pred_check
          %p184 = pneg %p85
        $region14: #{a_call__.1} parent=11 // pred_check_branch
          %186 = sbr.rel (%p184) target = $region16
        $region15: #{a_call__.1} parent=11 // pred_region
          _
        $region16: #{a_call__.1} parent=11 // pred_fallthru
          _
        // Predicated region
        $region17: #{a_call__.1} parent=11 // pred_check
          %p187 = pneg %p106
        $region18: #{a_call__.1} parent=11 // pred_check_branch
          %189 = sbr.rel (%p187) target = $region20
        $region19: #{a_call__.1} parent=11 // pred_region
          _
        $region20: #{a_call__.1} parent=11 // pred_fallthru
          _
        // Predicated region
        $region21: #{a_call__.1} parent=11 // pred_check
          %p190 = pneg %p127
        $region22: #{a_call__.1} parent=11 // pred_check_branch
          %192 = sbr.rel (%p190) target = $region24
        $region23: #{a_call__.1} parent=11 // pred_region
          _
        $region24: #{a_call__.1} parent=11 // pred_fallthru
          _
        // Predicated region
        $region25: #{a_call__.1} parent=11 // pred_check
          %p193 = pneg %p148
        $region26: #{a_call__.1} parent=11 // pred_check_branch
          %195 = sbr.rel (%p193) target = $region28
        $region27: #{a_call__.1} parent=11 // pred_region
          _
        $region28: #{a_call__.1} parent=11 // pred_fallthru
          _
      $region12: #{a_call__.1} parent=5 // pred_fallthru
        _
      %p196 = scmp.lt.s32.totalorder %s12, 4
      // Predicated region
      $region29: #{a_call__.1} parent=5 // pred_check
        %p197 = pneg %p196
      $region30: #{a_call__.1} parent=5 // pred_check_branch
        %199 = sbr.rel (%p197) target = $region32
      $region31: #{a_call__.1} parent=5 // pred_region
        // Predicated region
        $region33: #{a_call__.1} parent=31 // pred_check
          %p200 = pneg %p32
        $region34: #{a_call__.1} parent=31 // pred_check_branch
          %202 = sbr.rel (%p200) target = $region36
        $region35: #{a_call__.1} parent=31 // pred_region
          %s203 = sand.u32 %s22, 1
          %s204 = sand.u32 %s22, 1
          %s205 = smul.addr %s204, 64
          %s206 = scalar_lea.vmem [#allocation3], %s205
          %s207 = smul.u32 2, %s12
          %s208 = smul.addr %s207, 4
          %s209 = scalar_lea.vmem %s0, %s208
          // Predicated region
          $region37: #{a_call__.1} parent=35 // pred_check
            _
          $region38: #{a_call__.1} parent=35 // pred_check_branch
            %211 = sbr.rel (0) target = $region40
          $region39: #{a_call__.1} parent=35 // pred_region
            // Predicated region
            $region41: #{a_call__.1} parent=39 // pred_check
              _
            $region42: #{a_call__.1} parent=39 // pred_check_branch
              %213 = sbr.rel (0) target = $region44
            $region43: #{a_call__.1} parent=39 // pred_region
              // Predicated region
              $region56: #{a_call__.1} parent=43 // pred_check
                _
              $region57: #{a_call__.1} parent=43 // pred_check_branch
                %242 = sbr.rel (0) target = $region59
              $region58: #{a_call__.1} parent=43 // pred_region
                loop: start=0, step=1, limit=1
                $region60: #{a_call__.1} parent=58 // loop_pre_header
                  _
                $region61: #{a_call__.1} parent=58 // loop_header
                  %s244 = sphi 0, %s248
                  %p245 = scmp.ge.s32.totalorder %s244, 1
                  %s249 = sphi %s209, %s209
                  %s250 = sphi %s206, %s206
                $region62: #{a_call__.1} parent=58 // loop_header_branch
                  %247 = sbr.rel (%p245) target = $region66
                $region63: #{a_call__.1} parent=58 // loop_body
                  %v251 = vld [vmem:[%s249] sm:$0xff]
                  %252 = vst [vmem:[%s250] sm:$0xff] %v251
                  %v253 = vld [vmem:[%s249 + $0x20] sm:$0xff]
                  %254 = vst [vmem:[%s250 + $0x8] sm:$0xff] %v253
                  %v255 = vld [vmem:[%s249 + $0x40] sm:$0xff]
                  %256 = vst [vmem:[%s250 + $0x10] sm:$0xff] %v255
                  %v257 = vld [vmem:[%s249 + $0x60] sm:$0xff]
                  %258 = vst [vmem:[%s250 + $0x18] sm:$0xff] %v257
                  %v259 = vld [vmem:[%s249 + $0x80] sm:$0xff]
                  %260 = vst [vmem:[%s250 + $0x20] sm:$0xff] %v259
                  %v261 = vld [vmem:[%s249 + $0xa0] sm:$0xff]
                  %262 = vst [vmem:[%s250 + $0x28] sm:$0xff] %v261
                  %v263 = vld [vmem:[%s249 + $0xc0] sm:$0xff]
                  %264 = vst [vmem:[%s250 + $0x30] sm:$0xff] %v263
                  %v265 = vld [vmem:[%s249 + $0xe0] sm:$0xff]
                  %266 = vst [vmem:[%s250 + $0x38] sm:$0xff] %v265
                $region64: #{a_call__.1} parent=58 // loop_footer
                  %s248 = sadd.s32 1, %s244
                $region65: #{a_call__.1} parent=58 // loop_footer_branch
                  %243 = sbr.rel target = $region61
                $region66: #{a_call__.1} parent=58 // loop_exit
                  _
              $region59: #{a_call__.1} parent=43 // pred_fallthru
                _
              // Predicated region
              $region67: #{a_call__.1} parent=43 // pred_check
                _
              $region68: #{a_call__.1} parent=43 // pred_check_branch
                %268 = sbr.rel target = $region70
              $region69: #{a_call__.1} parent=43 // pred_region
                _
              $region70: #{a_call__.1} parent=43 // pred_fallthru
                _
            $region44: #{a_call__.1} parent=39 // pred_fallthru
              _
            // Predicated region
            $region45: #{a_call__.1} parent=39 // pred_check
              _
            $region46: #{a_call__.1} parent=39 // pred_check_branch
              %215 = sbr.rel target = $region48
            $region47: #{a_call__.1} parent=39 // pred_region
              loop: start=0, step=1, limit=1
              $region49: #{a_call__.1} parent=47 // loop_pre_header
                _
              $region50: #{a_call__.1} parent=47 // loop_header
                %s218 = sphi 0, %s222
                %p219 = scmp.ge.s32.totalorder %s218, 1
                %s223 = sphi %s209, %s209
                %s224 = sphi %s206, %s206
              $region51: #{a_call__.1} parent=47 // loop_header_branch
                %221 = sbr.rel (%p219) target = $region55
              $region52: #{a_call__.1} parent=47 // loop_body
                %v225 = vld [vmem:[%s223] sm:$0xff]
                %226 = vst [vmem:[%s224] sm:$0xff] %v225
                %v227 = vld [vmem:[%s223 + $0x20] sm:$0xff]
                %228 = vst [vmem:[%s224 + $0x8] sm:$0xff] %v227
                %v229 = vld [vmem:[%s223 + $0x40] sm:$0xff]
                %230 = vst [vmem:[%s224 + $0x10] sm:$0xff] %v229
                %v231 = vld [vmem:[%s223 + $0x60] sm:$0xff]
                %232 = vst [vmem:[%s224 + $0x18] sm:$0xff] %v231
                %v233 = vld [vmem:[%s223 + $0x80] sm:$0xff]
                %234 = vst [vmem:[%s224 + $0x20] sm:$0xff] %v233
                %v235 = vld [vmem:[%s223 + $0xa0] sm:$0xff]
                %236 = vst [vmem:[%s224 + $0x28] sm:$0xff] %v235
                %v237 = vld [vmem:[%s223 + $0xc0] sm:$0xff]
                %238 = vst [vmem:[%s224 + $0x30] sm:$0xff] %v237
                %v239 = vld [vmem:[%s223 + $0xe0] sm:$0xff]
                %240 = vst [vmem:[%s224 + $0x38] sm:$0xff] %v239
              $region53: #{a_call__.1} parent=47 // loop_footer
                %s222 = sadd.s32 1, %s218
              $region54: #{a_call__.1} parent=47 // loop_footer_branch
                %217 = sbr.rel target = $region50
              $region55: #{a_call__.1} parent=47 // loop_exit
                _
            $region48: #{a_call__.1} parent=39 // pred_fallthru
              _
          $region40: #{a_call__.1} parent=35 // pred_fallthru
            _
          %269 = vnop
        $region36: #{a_call__.1} parent=31 // pred_fallthru
          _
        // Predicated region
        $region71: #{a_call__.1} parent=31 // pred_check
          %p270 = pneg %p58
        $region72: #{a_call__.1} parent=31 // pred_check_branch
          %272 = sbr.rel (%p270) target = $region74
        $region73: #{a_call__.1} parent=31 // pred_region
          %s273 = smul.u32 32, %s12
          %p274 = scmp.lt.s32.totalorder %s273, 127
          %s275 = scalar_select %p274, %s273, 127
          %s276 = smul.addr %s275, 4
          %s277 = scalar_lea.vmem %s1, %s276
          %s278 = smul.u32 32, %s12
        $region74: #{a_call__.1} parent=31 // pred_fallthru
          _
      $region32: #{a_call__.1} parent=5 // pred_fallthru
        _
      %p279 = scmp.le.s32.totalorder 1, %s12
      %p280 = scmp.lt.s32.totalorder %s12, 5
      %p281 = pnand %p279, %p280
      %p282 = pneg %p281
      // Predicated region
      $region75: #{a_call__.1} parent=5 // pred_check
        _
      $region76: #{a_call__.1} parent=5 // pred_check_branch
        %284 = sbr.rel (%p281) target = $region78
      $region77: #{a_call__.1} parent=5 // pred_region
        %s285 = ssub.s32 %s12, 1
        %s286 = sand.u32 %s25, 1
        %s287 = sand.u32 %s25, 1
        %s288 = smul.addr %s287, 64
        %s289 = scalar_lea.vmem [#allocation3], %s288
        // Predicated region
        $region79: #{a_call__.1} parent=77 // pred_check
          %p290 = pneg %p38
        $region80: #{a_call__.1} parent=77 // pred_check_branch
          %292 = sbr.rel (%p290) target = $region82
        $region81: #{a_call__.1} parent=77 // pred_region
          _
        $region82: #{a_call__.1} parent=77 // pred_fallthru
          _
        %s293 = sand.u32 %s25, 1
        %s294 = sand.u32 %s25, 1
        %s295 = smul.addr %s294, 64
        %s296 = scalar_lea.vmem [#allocation3], %s295
        %p297 = pneg %p38
        %p298 = pneg %p35
        %s299 = smul.u32 32, %s17
        %p300 = scmp.lt.s32.totalorder %s299, 127
        %s301 = scalar_select %p300, %s299, 127
        %s302 = smul.addr %s301, 4
        %s303 = scalar_lea.vmem %s1, %s302
        %p304 = pneg %p64
        %p305 = pneg %p61
        %p306 = pneg %p85
        %p307 = pneg %p82
        %p308 = pneg %p106
        %p309 = pneg %p103
        %p310 = pneg %p127
        %p311 = pneg %p124
        %p312 = pneg %p148
        %p313 = pneg %p145
        %p314 = pneg %p169
        %p315 = pneg %p166
        %s316 = smul.u32 2, %s17
        %s317 = smul.u32 32, %s17
        %p318 = scmp.lt.s32.totalorder %s317, 127
        %s319 = scalar_select %p318, %s317, 127
        %s320 = smul.addr %s319, 4
        %s321 = scalar_lea.vmem %s1, %s320
        %s322 = smul.u32 32, %s17
        %p324 = scmp.eq.s32.totalorder %s17, 0
        // Predicated region
        $region83: #{a_call__.1} parent=77 // pred_check
          %p325 = pneg %p324
        $region84: #{a_call__.1} parent=77 // pred_check_branch
          %327 = sbr.rel (%p325) target = $region86
        $region85: #{a_call__.1} parent=77 // pred_region
          %328 = vst [vmem:[#allocation2] sm:$0xff] 0.0
          %329 = vst [vmem:[#allocation2 + $0x8] sm:$0xff] 0.0
          %330 = vst [vmem:[#allocation2 + $0x10] sm:$0xff] 0.0
          %331 = vst [vmem:[#allocation2 + $0x18] sm:$0xff] 0.0
          %332 = vst [vmem:[#allocation2 + $0x20] sm:$0xff] 0.0
          %333 = vst [vmem:[#allocation2 + $0x28] sm:$0xff] 0.0
          %334 = vst [vmem:[#allocation2 + $0x30] sm:$0xff] 0.0
          %335 = vst [vmem:[#allocation2 + $0x38] sm:$0xff] 0.0
        $region86: #{a_call__.1} parent=77 // pred_fallthru
          _
        %v336 = vld [vmem:[#allocation2] sm:$0xff]
        %v337 = vld [vmem:[#allocation2 + $0x8] sm:$0xff]
        %v338 = vld [vmem:[#allocation2 + $0x10] sm:$0xff]
        %v339 = vld [vmem:[#allocation2 + $0x18] sm:$0xff]
        %v340 = vld [vmem:[#allocation2 + $0x20] sm:$0xff]
        %v341 = vld [vmem:[#allocation2 + $0x28] sm:$0xff]
        %v342 = vld [vmem:[#allocation2 + $0x30] sm:$0xff]
        %v343 = vld [vmem:[#allocation2 + $0x38] sm:$0xff]
        %v344 = vld [vmem:[%s289] sm:$0xff]
        %v345 = vld [vmem:[%s289 + $0x8] sm:$0xff]
        %v346 = vld [vmem:[%s289 + $0x10] sm:$0xff]
        %v347 = vld [vmem:[%s289 + $0x18] sm:$0xff]
        %v348 = vld [vmem:[%s289 + $0x20] sm:$0xff]
        %v349 = vld [vmem:[%s289 + $0x28] sm:$0xff]
        %v350 = vld [vmem:[%s289 + $0x30] sm:$0xff]
        %v351 = vld [vmem:[%s289 + $0x38] sm:$0xff]
        %v352 = vld [vmem:[%s321] sm:$0xf]
        %v353 = vld [vmem:[%s321 + $0x4] sm:$0xf]
        %v354 = vld [vmem:[%s321 + $0x8] sm:$0xf]
        %v355 = vld [vmem:[%s321 + $0xc] sm:$0xf]
        %v356 = vld [vmem:[%s321 + $0x10] sm:$0xf]
        %v357 = vld [vmem:[%s321 + $0x14] sm:$0xf]
        %v358 = vld [vmem:[%s321 + $0x18] sm:$0xf]
        %v359 = vld [vmem:[%s321 + $0x1c] sm:$0xf]
        %v360 = vld [vmem:[%s321 + $0x20] sm:$0xf]
        %v361 = vld [vmem:[%s321 + $0x24] sm:$0xf]
        %v362 = vld [vmem:[%s321 + $0x28] sm:$0xf]
        %v363 = vld [vmem:[%s321 + $0x2c] sm:$0xf]
        %v364 = vld [vmem:[%s321 + $0x30] sm:$0xf]
        %v365 = vld [vmem:[%s321 + $0x34] sm:$0xf]
        %v366 = vld [vmem:[%s321 + $0x38] sm:$0xf]
        %v367 = vld [vmem:[%s321 + $0x3c] sm:$0xf]
        %v368 = vld [vmem:[%s321 + $0x40] sm:$0xf]
        %v369 = vld [vmem:[%s321 + $0x44] sm:$0xf]
        %v370 = vld [vmem:[%s321 + $0x48] sm:$0xf]
        %v371 = vld [vmem:[%s321 + $0x4c] sm:$0xf]
        %v372 = vld [vmem:[%s321 + $0x50] sm:$0xf]
        %v373 = vld [vmem:[%s321 + $0x54] sm:$0xf]
        %v374 = vld [vmem:[%s321 + $0x58] sm:$0xf]
        %v375 = vld [vmem:[%s321 + $0x5c] sm:$0xf]
        %v376 = vld [vmem:[%s321 + $0x60] sm:$0xf]
        %v377 = vld [vmem:[%s321 + $0x64] sm:$0xf]
        %v378 = vld [vmem:[%s321 + $0x68] sm:$0xf]
        %v379 = vld [vmem:[%s321 + $0x6c] sm:$0xf]
        %v380 = vld [vmem:[%s321 + $0x70] sm:$0xf]
        %v381 = vld [vmem:[%s321 + $0x74] sm:$0xf]
        %v382 = vld [vmem:[%s321 + $0x78] sm:$0xf]
        %v383 = vld [vmem:[%s321 + $0x7c] sm:$0xf]
        %v392 = vunpack.c.l.b16 %v344
        %v393 = vunpack.c.h.b16 %v344
        %v394 = vunpack.c.l.b16 %v345
        %v395 = vunpack.c.h.b16 %v345
        %v396 = vunpack.c.l.b16 %v346
        %v397 = vunpack.c.h.b16 %v346
        %v398 = vunpack.c.l.b16 %v347
        %v399 = vunpack.c.h.b16 %v347
        %v400 = vunpack.c.l.b16 %v348
        %v401 = vunpack.c.h.b16 %v348
        %v402 = vunpack.c.l.b16 %v349
        %v403 = vunpack.c.h.b16 %v349
        %v404 = vunpack.c.l.b16 %v350
        %v405 = vunpack.c.h.b16 %v350
        %v406 = vunpack.c.l.b16 %v351
        %v407 = vunpack.c.h.b16 %v351
        %v408 = vpack.c.b16 %v394, %v392
        %v409 = vpack.c.b16 %v395, %v393
        %v410 = vpack.c.b16 %v398, %v396
        %v411 = vpack.c.b16 %v399, %v397
        %v412 = vpack.c.b16 %v402, %v400
        %v413 = vpack.c.b16 %v403, %v401
        %v414 = vpack.c.b16 %v406, %v404
        %v415 = vpack.c.b16 %v407, %v405
        %v456 = vunpack.c.l.b16 %v352
        %v457 = vunpack.c.l.b16 %v353
        %v458 = vunpack.c.l.b16 %v354
        %v459 = vunpack.c.l.b16 %v355
        %v460 = vunpack.c.l.b16 %v356
        %v461 = vunpack.c.l.b16 %v357
        %v462 = vunpack.c.l.b16 %v358
        %v463 = vunpack.c.l.b16 %v359
        %v464 = vunpack.c.l.b16 %v360
        %v465 = vunpack.c.l.b16 %v361
        %v466 = vunpack.c.l.b16 %v362
        %v467 = vunpack.c.l.b16 %v363
        %v468 = vunpack.c.l.b16 %v364
        %v469 = vunpack.c.l.b16 %v365
        %v470 = vunpack.c.l.b16 %v366
        %v471 = vunpack.c.l.b16 %v367
        %v472 = vunpack.c.l.b16 %v368
        %v473 = vunpack.c.l.b16 %v369
        %v474 = vunpack.c.l.b16 %v370
        %v475 = vunpack.c.l.b16 %v371
        %v476 = vunpack.c.l.b16 %v372
        %v477 = vunpack.c.l.b16 %v373
        %v478 = vunpack.c.l.b16 %v374
        %v479 = vunpack.c.l.b16 %v375
        %v480 = vunpack.c.l.b16 %v376
        %v481 = vunpack.c.l.b16 %v377
        %v482 = vunpack.c.l.b16 %v378
        %v483 = vunpack.c.l.b16 %v379
        %v484 = vunpack.c.l.b16 %v380
        %v485 = vunpack.c.l.b16 %v381
        %v486 = vunpack.c.l.b16 %v382
        %v487 = vunpack.c.l.b16 %v383
        %v488 = vpack.c.b16 %v457, %v456
        %v489 = vpack.c.b16 %v459, %v458
        %v490 = vpack.c.b16 %v461, %v460
        %v491 = vpack.c.b16 %v463, %v462
        %v492 = vpack.c.b16 %v465, %v464
        %v493 = vpack.c.b16 %v467, %v466
        %v494 = vpack.c.b16 %v469, %v468
        %v495 = vpack.c.b16 %v471, %v470
        %v496 = vpack.c.b16 %v473, %v472
        %v497 = vpack.c.b16 %v475, %v474
        %v498 = vpack.c.b16 %v477, %v476
        %v499 = vpack.c.b16 %v479, %v478
        %v500 = vpack.c.b16 %v481, %v480
        %v501 = vpack.c.b16 %v483, %v482
        %v502 = vpack.c.b16 %v485, %v484
        %v503 = vpack.c.b16 %v487, %v486
        %520 = vmatprep.subr.bf16.mxu0 0
        %521 = vmatpush1.bf16.msra.mxu0 %v488
        %522 = vmatprep.subr.bf16.mxu0 0
        %523 = vmatpush1.bf16.msra.mxu0 %v489
        %524 = vmatprep.subr.bf16.mxu0 0
        %525 = vmatpush1.bf16.msra.mxu0 %v490
        %526 = vmatprep.subr.bf16.mxu0 0
        %527 = vmatpush1.bf16.msra.mxu0 %v491
        %528 = vmatprep.subr.bf16.mxu0 0
        %529 = vmatpush1.bf16.msra.mxu0 %v492
        %530 = vmatprep.subr.bf16.mxu0 0
        %531 = vmatpush1.bf16.msra.mxu0 %v493
        %532 = vmatprep.subr.bf16.mxu0 0
        %533 = vmatpush1.bf16.msra.mxu0 %v494
        %534 = vmatprep.subr.bf16.mxu0 0
        %535 = vmatpush1.bf16.msra.mxu0 %v495
        %536 = vmatprep.subr.bf16.mxu0 0
        %537 = vmatpush1.bf16.msra.mxu0 %v496
        %538 = vmatprep.subr.bf16.mxu0 0
        %539 = vmatpush1.bf16.msra.mxu0 %v497
        %540 = vmatprep.subr.bf16.mxu0 0
        %541 = vmatpush1.bf16.msra.mxu0 %v498
        %542 = vmatprep.subr.bf16.mxu0 0
        %543 = vmatpush1.bf16.msra.mxu0 %v499
        %544 = vmatprep.subr.bf16.mxu0 0
        %545 = vmatpush1.bf16.msra.mxu0 %v500
        %546 = vmatprep.subr.bf16.mxu0 0
        %547 = vmatpush1.bf16.msra.mxu0 %v501
        %548 = vmatprep.subr.bf16.mxu0 0
        %549 = vmatpush1.bf16.msra.mxu0 %v502
        %550 = vmatprep.subr.bf16.mxu0 0
        %551 = vmatpush1.bf16.msra.mxu0 %v503
        %552 = vmatprep.mubr.bf16.mxu0 %v409
        %553 = vmatmul.mubr.bf16.gmra.mrb[0].mxu0 %v408
        %v554 = vpop.f32.mrb[0].mxu0
        %v555 = vadd.f32 0.0, %v554
        %v556 = vpop.f32.mrb[0].mxu0
        %v557 = vpop.f32.mrb[0].mxu0
        %v558 = vadd.f32 0.0, %v557
        %v559 = vpop.f32.mrb[0].mxu0
        %560 = vmatprep.mubr.bf16.mxu0 %v411
        %561 = vmatmul.mubr.bf16.gmra.mrb[0].mxu0 %v410
        %v562 = vpop.f32.mrb[0].mxu0
        %v563 = vadd.f32 0.0, %v562
        %v564 = vpop.f32.mrb[0].mxu0
        %v565 = vpop.f32.mrb[0].mxu0
        %v566 = vadd.f32 0.0, %v565
        %v567 = vpop.f32.mrb[0].mxu0
        %568 = vmatprep.mubr.bf16.mxu0 %v413
        %569 = vmatmul.mubr.bf16.gmra.mrb[0].mxu0 %v412
        %v570 = vpop.f32.mrb[0].mxu0
        %v571 = vadd.f32 0.0, %v570
        %v572 = vpop.f32.mrb[0].mxu0
        %v573 = vpop.f32.mrb[0].mxu0
        %v574 = vadd.f32 0.0, %v573
        %v575 = vpop.f32.mrb[0].mxu0
        %576 = vmatprep.mubr.bf16.mxu0 %v415
        %577 = vmatmul.mubr.bf16.gmra.mrb[0].mxu0 %v414
        %v578 = vpop.f32.mrb[0].mxu0
        %v579 = vadd.f32 0.0, %v578
        %v580 = vpop.f32.mrb[0].mxu0
        %v581 = vpop.f32.mrb[0].mxu0
        %v582 = vadd.f32 0.0, %v581
        %v583 = vpop.f32.mrb[0].mxu0
        %584 = vdwg.mxu0
        %v585 = vadd.f32 %v336, %v555
        %v586 = vadd.f32 %v337, %v558
        %v587 = vadd.f32 %v338, %v563
        %v588 = vadd.f32 %v339, %v566
        %v589 = vadd.f32 %v340, %v571
        %v590 = vadd.f32 %v341, %v574
        %v591 = vadd.f32 %v342, %v579
        %v592 = vadd.f32 %v343, %v582
        %593 = vst [vmem:[#allocation2] sm:$0xff] %v585
        %594 = vst [vmem:[#allocation2 + $0x8] sm:$0xff] %v586
        %595 = vst [vmem:[#allocation2 + $0x10] sm:$0xff] %v587
        %596 = vst [vmem:[#allocation2 + $0x18] sm:$0xff] %v588
        %597 = vst [vmem:[#allocation2 + $0x20] sm:$0xff] %v589
        %598 = vst [vmem:[#allocation2 + $0x28] sm:$0xff] %v590
        %599 = vst [vmem:[#allocation2 + $0x30] sm:$0xff] %v591
        %600 = vst [vmem:[#allocation2 + $0x38] sm:$0xff] %v592
        %p601 = scmp.eq.s32.totalorder %s17, 3
        // Predicated region
        $region87: #{a_call__.1} parent=77 // pred_check
          %p602 = pneg %p601
        $region88: #{a_call__.1} parent=77 // pred_check_branch
          %604 = sbr.rel (%p602) target = $region90
        $region89: #{a_call__.1} parent=77 // pred_region
          %v605 = vld [vmem:[#allocation2] sm:$0xff]
          %v606 = vld [vmem:[#allocation2 + $0x8] sm:$0xff]
          %v607 = vld [vmem:[#allocation2 + $0x10] sm:$0xff]
          %v608 = vld [vmem:[#allocation2 + $0x18] sm:$0xff]
          %v609 = vld [vmem:[#allocation2 + $0x20] sm:$0xff]
          %v610 = vld [vmem:[#allocation2 + $0x28] sm:$0xff]
          %v611 = vld [vmem:[#allocation2 + $0x30] sm:$0xff]
          %v612 = vld [vmem:[#allocation2 + $0x38] sm:$0xff]
          %v613 = vadd.f32 %v605, %v606
          %v614 = vadd.f32 %v613, %v607
          %v615 = vadd.f32 %v614, %v608
          %v616 = vadd.f32 %v615, %v609
          %v617 = vadd.f32 %v616, %v610
          %v618 = vadd.f32 %v617, %v611
          %v619 = vadd.f32 %v618, %v612
          %v620 = vrot.slane %v619, 4
          %v621 = vadd.f32 %v619, %v620
          %v622 = vrot.slane %v621, 2
          %v623 = vadd.f32 %v621, %v622
          %v624 = vrot.slane %v623, 1
          %v625 = vadd.f32 %v623, %v624
          %v626 = vrcp.pop 64.0
          %v627 = vmul.f32 %v625, %v626
          %v628 = vsub.f32 %v605, %v627
          %v629 = vsub.f32 %v606, %v627
          %v630 = vsub.f32 %v607, %v627
          %v631 = vsub.f32 %v608, %v627
          %v632 = vsub.f32 %v609, %v627
          %v633 = vsub.f32 %v610, %v627
          %v634 = vsub.f32 %v611, %v627
          %v635 = vsub.f32 %v612, %v627
          %v636 = vmul.f32 %v628, %v628
          %v637 = vmul.f32 %v629, %v629
          %v638 = vmul.f32 %v630, %v630
          %v639 = vmul.f32 %v631, %v631
          %v640 = vmul.f32 %v632, %v632
          %v641 = vmul.f32 %v633, %v633
          %v642 = vmul.f32 %v634, %v634
          %v643 = vmul.f32 %v635, %v635
          %v644 = vadd.f32 %v636, %v637
          %v645 = vadd.f32 %v644, %v638
          %v646 = vadd.f32 %v645, %v639
          %v647 = vadd.f32 %v646, %v640
          %v648 = vadd.f32 %v647, %v641
          %v649 = vadd.f32 %v648, %v642
          %v650 = vadd.f32 %v649, %v643
          %v651 = vrot.slane %v650, 4
          %v652 = vadd.f32 %v650, %v651
          %v653 = vrot.slane %v652, 2
          %v654 = vadd.f32 %v652, %v653
          %v655 = vrot.slane %v654, 1
          %v656 = vadd.f32 %v654, %v655
          %v657 = vmul.f32 %v656, %v626
          %v658 = vld [vmem:[%s2] sm:$0x1]
          %v659 = vadd.f32 %v657, 1e-05
          %v660 = vrsqrt.pop %v659
          %v661 = vmul.f32 %v658, %v660
          %v662 = vld [vmem:[%s3] sm:$0x1]
          %v663 = vmul.f32 %v627, %v661
          %v664 = vsub.f32 %v662, %v663
          %v666 = vlaneseq
          %v667 = vshrl.u32 %v666, 7
          %v668 = vsub.s32 0, %v667
          %v669 = vrot.slane %v661, %v668
          %v671 = vmul.f32 %v605, %v669
          %v672 = vmul.f32 %v606, %v669
          %v673 = vmul.f32 %v607, %v669
          %v674 = vmul.f32 %v608, %v669
          %v675 = vmul.f32 %v609, %v669
          %v676 = vmul.f32 %v610, %v669
          %v677 = vmul.f32 %v611, %v669
          %v678 = vmul.f32 %v612, %v669
          %v680 = vlaneseq
          %v681 = vshrl.u32 %v680, 7
          %v682 = vsub.s32 0, %v681
          %v683 = vrot.slane %v664, %v682
          %v685 = vadd.f32 %v671, %v683
          %v686 = vadd.f32 %v672, %v683
          %v687 = vadd.f32 %v673, %v683
          %v688 = vadd.f32 %v674, %v683
          %v689 = vadd.f32 %v675, %v683
          %v690 = vadd.f32 %v676, %v683
          %v691 = vadd.f32 %v677, %v683
          %v692 = vadd.f32 %v678, %v683
          %vm693 = vcmp.ge.f32.partialorder %v685, 0.0
          %vm694 = vcmp.ge.f32.partialorder %v686, 0.0
          %vm695 = vcmp.ge.f32.partialorder %v687, 0.0
          %vm696 = vcmp.ge.f32.partialorder %v688, 0.0
          %vm697 = vcmp.ge.f32.partialorder %v689, 0.0
          %vm698 = vcmp.ge.f32.partialorder %v690, 0.0
          %vm699 = vcmp.ge.f32.partialorder %v691, 0.0
          %vm700 = vcmp.ge.f32.partialorder %v692, 0.0
          %v701 = vmul.f32 %v685, 0.1
          %v702 = vmul.f32 %v686, 0.1
          %v703 = vmul.f32 %v687, 0.1
          %v704 = vmul.f32 %v688, 0.1
          %v705 = vmul.f32 %v689, 0.1
          %v706 = vmul.f32 %v690, 0.1
          %v707 = vmul.f32 %v691, 0.1
          %v708 = vmul.f32 %v692, 0.1
          %v709 = vsel %vm693, %v685, %v701
          %v710 = vsel %vm694, %v686, %v702
          %v711 = vsel %vm695, %v687, %v703
          %v712 = vsel %vm696, %v688, %v704
          %v713 = vsel %vm697, %v689, %v705
          %v714 = vsel %vm698, %v690, %v706
          %v715 = vsel %vm699, %v691, %v707
          %v716 = vsel %vm700, %v692, %v708
          %v717 = vld [vmem:[%s4] sm:$0xff]
          %v718 = vld [vmem:[%s4 + $0x8] sm:$0xff]
          %v719 = vld [vmem:[%s4 + $0x10] sm:$0xff]
          %v720 = vld [vmem:[%s4 + $0x18] sm:$0xff]
          %v721 = vld [vmem:[%s4 + $0x20] sm:$0xff]
          %v722 = vld [vmem:[%s4 + $0x28] sm:$0xff]
          %v723 = vld [vmem:[%s4 + $0x30] sm:$0xff]
          %v724 = vld [vmem:[%s4 + $0x38] sm:$0xff]
          %v725 = vld [vmem:[%s4 + $0x40] sm:$0xff]
          %v726 = vld [vmem:[%s4 + $0x48] sm:$0xff]
          %v727 = vld [vmem:[%s4 + $0x50] sm:$0xff]
          %v728 = vld [vmem:[%s4 + $0x58] sm:$0xff]
          %v729 = vld [vmem:[%s4 + $0x60] sm:$0xff]
          %v730 = vld [vmem:[%s4 + $0x68] sm:$0xff]
          %v731 = vld [vmem:[%s4 + $0x70] sm:$0xff]
          %v732 = vld [vmem:[%s4 + $0x78] sm:$0xff]
          %v733 = vld [vmem:[%s5] sm:$0x1]
          %v735 = vlaneseq
          %v736 = vshrl.u32 %v735, 7
          %v737 = vsub.s32 0, %v736
          %v738 = vrot.slane %v733, %v737
          %740 = vmatprep.subr.mxu0 0.0
          %741 = vmatpush1.msra.mxu0 %v717
          %742 = vmatprep.subr.mxu0 0.0
          %743 = vmatpush1.msra.mxu0 %v718
          %744 = vmatprep.subr.mxu0 0.0
          %745 = vmatpush1.msra.mxu0 %v719
          %746 = vmatprep.subr.mxu0 0.0
          %747 = vmatpush1.msra.mxu0 %v720
          %748 = vmatprep.subr.mxu0 0.0
          %749 = vmatpush1.msra.mxu0 %v721
          %750 = vmatprep.subr.mxu0 0.0
          %751 = vmatpush1.msra.mxu0 %v722
          %752 = vmatprep.subr.mxu0 0.0
          %753 = vmatpush1.msra.mxu0 %v723
          %754 = vmatprep.subr.mxu0 0.0
          %755 = vmatpush1.msra.mxu0 %v724
          %756 = vmatprep.subr.mxu0 0.0
          %757 = vmatpush1.msra.mxu0 %v725
          %758 = vmatprep.subr.mxu0 0.0
          %759 = vmatpush1.msra.mxu0 %v726
          %760 = vmatprep.subr.mxu0 0.0
          %761 = vmatpush1.msra.mxu0 %v727
          %762 = vmatprep.subr.mxu0 0.0
          %763 = vmatpush1.msra.mxu0 %v728
          %764 = vmatprep.subr.mxu0 0.0
          %765 = vmatpush1.msra.mxu0 %v729
          %766 = vmatprep.subr.mxu0 0.0
          %767 = vmatpush1.msra.mxu0 %v730
          %768 = vmatprep.subr.mxu0 0.0
          %769 = vmatpush1.msra.mxu0 %v731
          %770 = vmatprep.subr.mxu0 0.0
          %771 = vmatpush1.msra.mxu0 %v732
          %772 = vmatprep.subr.mxu0 0.0
          %773 = vmatpush1.msra.mxu0 0.0
          %774 = vmatprep.subr.mxu0 0.0
          %775 = vmatpush1.msra.mxu0 0.0
          %776 = vmatprep.subr.mxu0 0.0
          %777 = vmatpush1.msra.mxu0 0.0
          %778 = vmatprep.subr.mxu0 0.0
          %779 = vmatpush1.msra.mxu0 0.0
          %780 = vmatprep.subr.mxu0 0.0
          %781 = vmatpush1.msra.mxu0 0.0
          %782 = vmatprep.subr.mxu0 0.0
          %783 = vmatpush1.msra.mxu0 0.0
          %784 = vmatprep.subr.mxu0 0.0
          %785 = vmatpush1.msra.mxu0 0.0
          %786 = vmatprep.subr.mxu0 0.0
          %787 = vmatpush1.msra.mxu0 0.0
          %788 = vmatprep.subr.mxu0 0.0
          %789 = vmatpush1.msra.mxu0 0.0
          %790 = vmatprep.subr.mxu0 0.0
          %791 = vmatpush1.msra.mxu0 0.0
          %792 = vmatprep.subr.mxu0 0.0
          %793 = vmatpush1.msra.mxu0 0.0
          %794 = vmatprep.subr.mxu0 0.0
          %795 = vmatpush1.msra.mxu0 0.0
          %796 = vmatprep.subr.mxu0 0.0
          %797 = vmatpush1.msra.mxu0 0.0
          %798 = vmatprep.subr.mxu0 0.0
          %799 = vmatpush1.msra.mxu0 0.0
          %800 = vmatprep.subr.mxu0 0.0
          %801 = vmatpush1.msra.mxu0 0.0
          %802 = vmatprep.subr.mxu0 0.0
          %803 = vmatpush1.msra.mxu0 0.0
          %804 = vmatprep.mubr.f32.mxu0 0.0
          %805 = vmatmul.mubr.f32.gmra.mrb[0].mxu0 %v709
          %v806 = vpop.f32.mrb[0].mxu0
          %v807 = vadd.f32 %v738, %v806
          %v808 = vpop.f32.mrb[0].mxu0
          %809 = vmatprep.mubr.f32.mxu0 0.0
          %810 = vmatmul.mubr.f32.gmra.mrb[0].mxu0 %v710
          %v811 = vpop.f32.mrb[0].mxu0
          %v812 = vadd.f32 %v738, %v811
          %v813 = vpop.f32.mrb[0].mxu0
          %814 = vmatprep.mubr.f32.mxu0 0.0
          %815 = vmatmul.mubr.f32.gmra.mrb[0].mxu0 %v711
          %v816 = vpop.f32.mrb[0].mxu0
          %v817 = vadd.f32 %v738, %v816
          %v818 = vpop.f32.mrb[0].mxu0
          %819 = vmatprep.mubr.f32.mxu0 0.0
          %820 = vmatmul.mubr.f32.gmra.mrb[0].mxu0 %v712
          %v821 = vpop.f32.mrb[0].mxu0
          %v822 = vadd.f32 %v738, %v821
          %v823 = vpop.f32.mrb[0].mxu0
          %824 = vmatprep.mubr.f32.mxu0 0.0
          %825 = vmatmul.mubr.f32.gmra.mrb[0].mxu0 %v713
          %v826 = vpop.f32.mrb[0].mxu0
          %v827 = vadd.f32 %v738, %v826
          %v828 = vpop.f32.mrb[0].mxu0
          %829 = vmatprep.mubr.f32.mxu0 0.0
          %830 = vmatmul.mubr.f32.gmra.mrb[0].mxu0 %v714
          %v831 = vpop.f32.mrb[0].mxu0
          %v832 = vadd.f32 %v738, %v831
          %v833 = vpop.f32.mrb[0].mxu0
          %834 = vmatprep.mubr.f32.mxu0 0.0
          %835 = vmatmul.mubr.f32.gmra.mrb[0].mxu0 %v715
          %v836 = vpop.f32.mrb[0].mxu0
          %v837 = vadd.f32 %v738, %v836
          %v838 = vpop.f32.mrb[0].mxu0
          %839 = vmatprep.mubr.f32.mxu0 0.0
          %840 = vmatmul.mubr.f32.gmra.mrb[0].mxu0 %v716
          %v841 = vpop.f32.mrb[0].mxu0
          %v842 = vadd.f32 %v738, %v841
          %v843 = vpop.f32.mrb[0].mxu0
          %844 = vdwg.mxu0
          %845 = vmax.xlane.f32.xlu0 %v807
          %v846 = vpop.xlane.xlu0 %845
          %847 = vmax.xlane.f32.xlu0 %v812
          %v848 = vpop.xlane.xlu0 %847
          %849 = vmax.xlane.f32.xlu0 %v817
          %v850 = vpop.xlane.xlu0 %849
          %851 = vmax.xlane.f32.xlu0 %v822
          %v852 = vpop.xlane.xlu0 %851
          %853 = vmax.xlane.f32.xlu0 %v827
          %v854 = vpop.xlane.xlu0 %853
          %855 = vmax.xlane.f32.xlu0 %v832
          %v856 = vpop.xlane.xlu0 %855
          %857 = vmax.xlane.f32.xlu0 %v837
          %v858 = vpop.xlane.xlu0 %857
          %859 = vmax.xlane.f32.xlu0 %v842
          %v860 = vpop.xlane.xlu0 %859
          %v861 = vsub.f32 %v807, %v846
          %v862 = vsub.f32 %v812, %v848
          %v863 = vsub.f32 %v817, %v850
          %v864 = vsub.f32 %v822, %v852
          %v865 = vsub.f32 %v827, %v854
          %v866 = vsub.f32 %v832, %v856
          %v867 = vsub.f32 %v837, %v858
          %v868 = vsub.f32 %v842, %v860
          %v869 = vmul.f32 %v861, 1.442695
          %v870 = vpow.pop %v869
          %v871 = vmul.f32 %v862, 1.442695
          %v872 = vpow.pop %v871
          %v873 = vmul.f32 %v863, 1.442695
          %v874 = vpow.pop %v873
          %v875 = vmul.f32 %v864, 1.442695
          %v876 = vpow.pop %v875
          %v877 = vmul.f32 %v865, 1.442695
          %v878 = vpow.pop %v877
          %v879 = vmul.f32 %v866, 1.442695
          %v880 = vpow.pop %v879
          %v881 = vmul.f32 %v867, 1.442695
          %v882 = vpow.pop %v881
          %v883 = vmul.f32 %v868, 1.442695
          %v884 = vpow.pop %v883
          %885 = vadd.xlane.f32.xlu0 %v870
          %v886 = vpop.xlane.xlu0 %885
          %887 = vadd.xlane.f32.xlu0 %v872
          %v888 = vpop.xlane.xlu0 %887
          %889 = vadd.xlane.f32.xlu0 %v874
          %v890 = vpop.xlane.xlu0 %889
          %891 = vadd.xlane.f32.xlu0 %v876
          %v892 = vpop.xlane.xlu0 %891
          %893 = vadd.xlane.f32.xlu0 %v878
          %v894 = vpop.xlane.xlu0 %893
          %895 = vadd.xlane.f32.xlu0 %v880
          %v896 = vpop.xlane.xlu0 %895
          %897 = vadd.xlane.f32.xlu0 %v882
          %v898 = vpop.xlane.xlu0 %897
          %899 = vadd.xlane.f32.xlu0 %v884
          %v900 = vpop.xlane.xlu0 %899
          %v901 = vrcp.pop %v886
          %v902 = vrcp.pop %v888
          %v903 = vrcp.pop %v890
          %v904 = vrcp.pop %v892
          %v905 = vrcp.pop %v894
          %v906 = vrcp.pop %v896
          %v907 = vrcp.pop %v898
          %v908 = vrcp.pop %v900
          %v909 = vmul.f32 %v870, %v901
          %v910 = vmul.f32 %v872, %v902
          %v911 = vmul.f32 %v874, %v903
          %v912 = vmul.f32 %v876, %v904
          %v913 = vmul.f32 %v878, %v905
          %v914 = vmul.f32 %v880, %v906
          %v915 = vmul.f32 %v882, %v907
          %v916 = vmul.f32 %v884, %v908
          %917 = vst [vmem:[%s6] sm:$0xff] %v909
          %918 = vst [vmem:[%s6 + $0x8] sm:$0xff] %v910
          %919 = vst [vmem:[%s6 + $0x10] sm:$0xff] %v911
          %920 = vst [vmem:[%s6 + $0x18] sm:$0xff] %v912
          %921 = vst [vmem:[%s6 + $0x20] sm:$0xff] %v913
          %922 = vst [vmem:[%s6 + $0x28] sm:$0xff] %v914
          %923 = vst [vmem:[%s6 + $0x30] sm:$0xff] %v915
          %924 = vst [vmem:[%s6 + $0x38] sm:$0xff] %v916
        $region90: #{a_call__.1} parent=77 // pred_fallthru
          _
        // Predicated region
        $region91: #{a_call__.1} parent=77 // pred_check
          %p925 = pneg %p166
        $region92: #{a_call__.1} parent=77 // pred_check_branch
          %927 = sbr.rel (%p925) target = $region94
        $region93: #{a_call__.1} parent=77 // pred_region
          _
        $region94: #{a_call__.1} parent=77 // pred_fallthru
          _
        // Predicated region
        $region95: #{a_call__.1} parent=77 // pred_check
          %p928 = pneg %p166
        $region96: #{a_call__.1} parent=77 // pred_check_branch
          %930 = sbr.rel (%p928) target = $region98
        $region97: #{a_call__.1} parent=77 // pred_region
          _
        $region98: #{a_call__.1} parent=77 // pred_fallthru
          _
      $region78: #{a_call__.1} parent=5 // pred_fallthru
        _
      %p931 = scmp.le.s32.totalorder 2, %s12
      // Predicated region
      $region99: #{a_call__.1} parent=5 // pred_check
        %p932 = pneg %p931
      $region100: #{a_call__.1} parent=5 // pred_check_branch
        %934 = sbr.rel (%p932) target = $region102
      $region101: #{a_call__.1} parent=5 // pred_region
        %s935 = ssub.s32 %s12, 2
      $region102: #{a_call__.1} parent=5 // pred_fallthru
        _
    $region6: #{a_call__.1} parent=1 // loop_footer
      %s16 = sadd.s32 1, %s12
    $region7: #{a_call__.1} parent=1 // loop_footer_branch
      %11 = sbr.rel target = $region3
    $region8: #{a_call__.1} parent=1 // loop_exit
      _

</llo_original>
